<compile_context>
chip_gen: v7x
topology: tpu7x:2x2x1
jax: 0.10.0
libtpu: 0.0.40
codegen_flags: <defaults>
</compile_context>

<pallas_src>
import math

import jax
import jax.numpy as jnp
from jax.experimental import pallas as pl
from jax.experimental.pallas import tpu as pltpu


def _round_up(n, m):
    return ((n + m - 1) // m) * m


def mlp_kernel(x_ref, w1_ref, b_ref, w2_ref, o_ref):
    # x_ref:  (TB, 16)   input rows (x dtype, f32 or bf16)
    # w1_ref: (16, 16)   fc1 weight, hidden padded 12->16 (weight dtype)
    # b_ref:  (2, 16)    f32: row 0 = b1 (padded), row 1 = b2 (padded)
    # w2_ref: (16, 16)   fc2 weight, padded (weight dtype)
    # o_ref:  (TB, 10)   compact f32 output (last dim == full array dim)
    n_out = o_ref.shape[-1]

    h = jnp.dot(x_ref[...].astype(w1_ref.dtype), w1_ref[...],
                preferred_element_type=jnp.float32)          # (TB, 16) f32
    h = jnp.maximum(h + b_ref[0:1, :], 0.0)                  # bias1 + ReLU in f32
    out = jnp.dot(h.astype(w2_ref.dtype), w2_ref[...],
                  preferred_element_type=jnp.float32)        # (TB, 16) f32
    out = out + b_ref[1:2, :]                                # bias2 in f32
    o_ref[...] = out[:, :n_out].astype(o_ref.dtype)          # store only valid cols


def mlp_forward(x, w1, b1, w2, b2, *, block_b=8192, weight_dtype=None):
    """x: (B, 16); w1: (12, 16), b1: (12,), w2: (10, 12), b2: (10,) in PyTorch
    (out, in) layout.  Returns (B, 10) float32.

    Pass bf16 `x` (and/or weight_dtype=jnp.bfloat16) for the input-bandwidth
    win; accumulation, bias adds and ReLU remain in f32 inside the kernel.
    """
    B, d_in = x.shape
    d_h = w1.shape[0]
    d_out = w2.shape[0]
    f32 = jnp.float32
    wdt = x.dtype if weight_dtype is None else weight_dtype

    # Pad hidden/output feature dims to 16 (sublane-friendly, tiny, resident).
    d_p = _round_up(max(d_h, d_out), 16)

    w1_p = jnp.zeros((d_in, d_p), wdt).at[:, :d_h].set(w1.T.astype(wdt))
    w2_p = jnp.zeros((d_p, d_p), wdt).at[:d_h, :d_out].set(w2.T.astype(wdt))
    b_p = jnp.zeros((2, d_p), f32)
    b_p = b_p.at[0, :d_h].set(b1.astype(f32))
    b_p = b_p.at[1, :d_out].set(b2.astype(f32))

    # Batch tile: multiple of 8 sublanes; large enough to amortize the ~0.35 us
    # per-grid-step overhead.  Ragged boundary handled by Pallas masking
    # (grid = cdiv(B, tb)) -- no wrapper-side padding copy of x.
    tb = _round_up(min(block_b, B), 8)
    grid = (pl.cdiv(B, tb),)

    out = pl.pallas_call(
        mlp_kernel,
        out_shape=jax.ShapeDtypeStruct((B, d_out), f32),
        grid=grid,
        in_specs=[
            pl.BlockSpec((tb, d_in), lambda i: (i, 0)),   # x: streamed over batch
            pl.BlockSpec((d_in, d_p), lambda i: (0, 0)),  # w1: VMEM-resident
            pl.BlockSpec((2, d_p), lambda i: (0, 0)),     # packed biases: resident
            pl.BlockSpec((d_p, d_p), lambda i: (0, 0)),   # w2: VMEM-resident
        ],
        out_specs=pl.BlockSpec((tb, d_out), lambda i: (i, 0)),  # compact output
        compiler_params=pltpu.CompilerParams(
            dimension_semantics=("parallel",),
            vmem_limit_bytes=32 * 1024 * 1024,  # v5e scoped default is only 16 MiB
        ),
    )(x, w1_p, b_p, w2_p)
    return out


def kaiming_uniform(key, fan_out, fan_in, dtype=jnp.float32):
    # Matches nn.init.kaiming_uniform_ defaults (a=0 -> gain=sqrt(2), fan_in
    # mode): bound = gain * sqrt(3 / fan_in).  PyTorch weight shape (out, in).
    gain = math.sqrt(2.0)
    bound = gain * math.sqrt(3.0 / fan_in)
    return jax.random.uniform(key, (fan_out, fan_in), dtype,
                              minval=-bound, maxval=bound)


if __name__ == "__main__":
    key = jax.random.PRNGKey(0)
    k_x, k_x2, k_w1, k_w2 = jax.random.split(key, 4)

    # Deterministic parameter init mirroring MLP.weight_init():
    # kaiming_uniform_ on weights, zero biases.
    w1 = kaiming_uniform(k_w1, 12, 16)   # (out=12, in=16)
    b1 = jnp.zeros((12,), jnp.float32)
    w2 = kaiming_uniform(k_w2, 10, 12)   # (out=10, in=12)
    b2 = jnp.zeros((10,), jnp.float32)

    def ref_fwd(x):
        return jnp.maximum(x @ w1.T + b1, 0.0) @ w2.T + b2

    # Small demo batch (f32 path, tight tolerance).
    x = jax.random.normal(k_x, (8, 16), dtype=jnp.float32)
    out = jax.block_until_ready(mlp_forward(x, w1, b1, w2, b2))
    assert out.shape == (8, 10)
    assert jnp.allclose(out, ref_fwd(x), atol=1e-5, rtol=1e-5)

    # Non-multiple-of-8 batch exercises the ragged boundary-block masking path.
    x2 = jax.random.normal(k_x2, (37, 16), dtype=jnp.float32)
    out2 = jax.block_until_ready(mlp_forward(x2, w1, b1, w2, b2))
    assert out2.shape == (37, 10)
    assert jnp.allclose(out2, ref_fwd(x2), atol=1e-5, rtol=1e-5)

    # bf16 handoff path (halved input HBM read); looser tolerance for bf16
    # rounding of x/weights/h, accumulation stays f32.
    out_bf = jax.block_until_ready(
        mlp_forward(x.astype(jnp.bfloat16), w1, b1, w2, b2))
    assert out_bf.shape == (8, 10)
    assert jnp.allclose(out_bf, ref_fwd(x), atol=5e-2, rtol=5e-2)

    print("KERNEL_OK")
</pallas_src>

<mosaic_0001>
module attributes {stable_mosaic.version = 11 : i64} {
  func.func @mlp_kernel(%arg0: i32, %arg1: memref<8x16xf32, #tpu.memory_space<vmem>>, %arg2: memref<16x16xf32, #tpu.memory_space<vmem>>, %arg3: memref<2x16xf32, #tpu.memory_space<vmem>>, %arg4: memref<16x16xf32, #tpu.memory_space<vmem>>, %arg5: memref<8x10xf32, #tpu.memory_space<vmem>>) attributes {dimension_semantics = [#tpu.dimension_semantics<parallel>], iteration_bounds = array<i64: 1>, scalar_prefetch = 0 : i64, scratch_operands = 0 : i64, tpu.core_type = #tpu.core_type<tc>, window_params = [{transform_indices = @transform_0, window_bounds = array<i64: 8, 16>}, {pipeline_mode = #tpu.pipeline_mode<synchronous>, transform_indices = @transform_1, window_bounds = array<i64: 16, 16>}, {pipeline_mode = #tpu.pipeline_mode<synchronous>, transform_indices = @transform_2, window_bounds = array<i64: 2, 16>}, {pipeline_mode = #tpu.pipeline_mode<synchronous>, transform_indices = @transform_3, window_bounds = array<i64: 16, 16>}, {transform_indices = @transform_4, window_bounds = array<i64: 8, 10>}]} {
    %c0 = arith.constant 0 : index
    %c0_0 = arith.constant 0 : index
    %0 = vector.load %arg1[%c0, %c0_0] : memref<8x16xf32, #tpu.memory_space<vmem>>, vector<8x16xf32>
    %c0_1 = arith.constant 0 : index
    %c0_2 = arith.constant 0 : index
    %1 = vector.load %arg2[%c0_1, %c0_2] : memref<16x16xf32, #tpu.memory_space<vmem>>, vector<16x16xf32>
    %cst = arith.constant dense<0.000000e+00> : vector<8x16xf32>
    %2 = tpu.matmul %0, %1, %cst {dimension_numbers = #tpu.dot_dimension_numbers<[1], [0], [0], [1], [0, 0, 1, 1], [], []>} : vector<8x16xf32>, vector<16x16xf32>, vector<8x16xf32> -> vector<8x16xf32>
    %c0_3 = arith.constant 0 : index
    %c0_4 = arith.constant 0 : index
    %3 = vector.load %arg3[%c0_3, %c0_4] : memref<2x16xf32, #tpu.memory_space<vmem>>, vector<1x16xf32>
    %4 = vector.broadcast %3 : vector<1x16xf32> to vector<8x16xf32>
    %5 = arith.addf %2, %4 : vector<8x16xf32>
    %cst_5 = arith.constant 0.000000e+00 : f32
    %6 = vector.broadcast %cst_5 : f32 to vector<8x16xf32>
    %7 = arith.maximumf %5, %6 : vector<8x16xf32>
    %c0_6 = arith.constant 0 : index
    %c0_7 = arith.constant 0 : index
    %8 = vector.load %arg4[%c0_6, %c0_7] : memref<16x16xf32, #tpu.memory_space<vmem>>, vector<16x16xf32>
    %cst_8 = arith.constant dense<0.000000e+00> : vector<8x16xf32>
    %9 = tpu.matmul %7, %8, %cst_8 {dimension_numbers = #tpu.dot_dimension_numbers<[1], [0], [0], [1], [0, 0, 1, 1], [], []>} : vector<8x16xf32>, vector<16x16xf32>, vector<8x16xf32> -> vector<8x16xf32>
    %c1 = arith.constant 1 : index
    %c0_9 = arith.constant 0 : index
    %10 = vector.load %arg3[%c1, %c0_9] : memref<2x16xf32, #tpu.memory_space<vmem>>, vector<1x16xf32>
    %11 = vector.broadcast %10 : vector<1x16xf32> to vector<8x16xf32>
    %12 = arith.addf %9, %11 : vector<8x16xf32>
    %13 = vector.extract_strided_slice %12 {offsets = [0, 0], sizes = [8, 10], strides = [1, 1]} : vector<8x16xf32> to vector<8x10xf32>
    %c0_10 = arith.constant 0 : index
    %c0_11 = arith.constant 0 : index
    %14 = vector.load %arg5[%c0_10, %c0_11] : memref<8x10xf32, #tpu.memory_space<vmem>>, vector<8x10xf32>
    tpu.vector_store %arg5[%c0_10, %c0_11], %13 {strides = array<i32>} : memref<8x10xf32, #tpu.memory_space<vmem>>, vector<8x10xf32>,
    return
  }
  func.func @transform_0(%arg0: i32) -> (i32, i32) {
    %c0_i32 = arith.constant 0 : i32
    %c0_i32_0 = arith.constant 0 : i32
    return %arg0, %c0_i32 : i32, i32
  }
  func.func @transform_1(%arg0: i32) -> (i32, i32) {
    %c0_i32 = arith.constant 0 : i32
    %c0_i32_0 = arith.constant 0 : i32
    %c0_i32_1 = arith.constant 0 : i32
    return %c0_i32, %c0_i32_0 : i32, i32
  }
  func.func @transform_2(%arg0: i32) -> (i32, i32) {
    %c0_i32 = arith.constant 0 : i32
    %c0_i32_0 = arith.constant 0 : i32
    %c0_i32_1 = arith.constant 0 : i32
    return %c0_i32, %c0_i32_0 : i32, i32
  }
  func.func @transform_3(%arg0: i32) -> (i32, i32) {
    %c0_i32 = arith.constant 0 : i32
    %c0_i32_0 = arith.constant 0 : i32
    %c0_i32_1 = arith.constant 0 : i32
    return %c0_i32, %c0_i32_0 : i32, i32
  }
  func.func @transform_4(%arg0: i32) -> (i32, i32) {
    %c0_i32 = arith.constant 0 : i32
    %c0_i32_0 = arith.constant 0 : i32
    return %arg0, %c0_i32 : i32, i32
  }
}

</mosaic_0001>

<llo_original>
// kernel: tpu_custom_call.1
$region0: #{tpu_custom_call.1}
  #allocation0 [shape = 'u32[]', space=smem, size = 0x4, offset = 0x4, fixed_abs, tag = 'smem constant byte address 0x4 - core index']
  #allocation1 [shape = 'u32[144,128]{1,0:T(1,128)}', space=vmem, size = 0x12000, scoped, tag = 'internal scratch']
  %s0 = inlined_call_operand.hbm [shape: f32[8,16], index: 0, kind: input, shape index: {}]
  %s1 = inlined_call_operand.hbm [shape: f32[16,16], index: 1, kind: input, shape index: {}]
  %s2 = inlined_call_operand.vmem [shape: f32[2,16], index: 2, kind: input, shape index: {}]
  %s3 = inlined_call_operand.hbm [shape: f32[16,16], index: 3, kind: input, shape index: {}]
  %s4 = inlined_call_operand.hbm [shape: f32[8,10], index: 4, kind: output, shape index: {}]
  %s5 = sld [smem:[#allocation0]]
  $region38: #{tpu_custom_call.1} parent=0
    _
  %s7 = ssub.s32 1, %s5
  %s8 = scalar_select 0, %s7, %s5
  $region1: #{tpu_custom_call.1} parent=0
    #allocation2 [shape = 'u8[4096]{0}', space=vmem, size = 0x1000, scoped, tag = 'input window, operand 0, single buffered']
    #allocation3 [shape = 's32[1]{0}', space=sflag, size = 0x4, scoped, tag = 'scoped memory for tpu_custom_call.1']
    #allocation4 [shape = 's32[1]{0}', space=sflag, size = 0x4, scoped, tag = 'scoped memory for tpu_custom_call.1']
    #allocation5 [shape = 'u8[8192]{0}', space=vmem, size = 0x2000, scoped, tag = 'input window, operand 1, single buffered']
    #allocation6 [shape = 's32[1]{0}', space=sflag, size = 0x4, scoped, tag = 'scoped memory for tpu_custom_call.1']
    #allocation7 [shape = 'u8[8192]{0}', space=vmem, size = 0x2000, scoped, tag = 'input window, operand 3, single buffered']
    #allocation8 [shape = 'u8[4096]{0}', space=vmem, size = 0x1000, scoped, tag = 'output window, operand 0, single buffered']
    %9 = vsyncpa [#allocation3], 0
    %10 = vsyncpa [#allocation6], 0
    %11 = vsyncpa [#allocation4], 0
    // Predicated region
    $region2: #{tpu_custom_call.1} parent=1 // pred_check
      _
    $region3: #{tpu_custom_call.1} parent=1 // pred_check_branch
      %13 = sbr.rel (0) target = $region5
    $region4: #{tpu_custom_call.1} parent=1 // pred_region
      %s15 = ssub.s32 128, 128
      %16 = vsyncadd [#allocation3], %s15
      %s18 = sshll.u32 [#allocation2], 4
      %s19 = int_to_ptr.vmem [resolvable:$true] %s18
      %21 = dma.hbm_to_vmem [thread:$0]  %s0, 128, %s19, [#allocation3]
    $region5: #{tpu_custom_call.1} parent=1 // pred_fallthru
      _
    // Predicated region
    $region6: #{tpu_custom_call.1} parent=1 // pred_check
      _
    $region7: #{tpu_custom_call.1} parent=1 // pred_check_branch
      %23 = sbr.rel (0) target = $region9
    $region8: #{tpu_custom_call.1} parent=1 // pred_region
      %s25 = ssub.s32 256, 256
      %26 = vsyncadd [#allocation6], %s25
      %s27 = sshll.u32 [#allocation5], 4
      %s28 = int_to_ptr.vmem [resolvable:$true] %s27
      %33 = dma.hbm_to_vmem [thread:$0]  %s1, 256, %s28, [#allocation6], 128, 128, 8
    $region9: #{tpu_custom_call.1} parent=1 // pred_fallthru
      _
    // Predicated region
    $region10: #{tpu_custom_call.1} parent=1 // pred_check
      _
    $region11: #{tpu_custom_call.1} parent=1 // pred_check_branch
      %35 = sbr.rel (0) target = $region13
    $region12: #{tpu_custom_call.1} parent=1 // pred_region
      _
    $region13: #{tpu_custom_call.1} parent=1 // pred_fallthru
      _
    // Predicated region
    $region14: #{tpu_custom_call.1} parent=1 // pred_check
      _
    $region15: #{tpu_custom_call.1} parent=1 // pred_check_branch
      %37 = sbr.rel (0) target = $region17
    $region16: #{tpu_custom_call.1} parent=1 // pred_region
      %s39 = ssub.s32 256, 256
      %40 = vsyncadd [#allocation6], %s39
      %s41 = sshll.u32 [#allocation7], 4
      %s42 = int_to_ptr.vmem [resolvable:$true] %s41
      %47 = dma.hbm_to_vmem [thread:$0]  %s3, 256, %s42, [#allocation6], 128, 128, 8
    $region17: #{tpu_custom_call.1} parent=1 // pred_fallthru
      _
    // Predicated region
    $region18: #{tpu_custom_call.1} parent=1 // pred_check
      _
    $region19: #{tpu_custom_call.1} parent=1 // pred_check_branch
      %49 = sbr.rel (0) target = $region21
    $region20: #{tpu_custom_call.1} parent=1 // pred_region
      %50 = dma.done [#allocation3], 128
    $region21: #{tpu_custom_call.1} parent=1 // pred_fallthru
      _
    // Predicated region
    $region22: #{tpu_custom_call.1} parent=1 // pred_check
      _
    $region23: #{tpu_custom_call.1} parent=1 // pred_check_branch
      %52 = sbr.rel (0) target = $region25
    $region24: #{tpu_custom_call.1} parent=1 // pred_region
      %53 = dma.done [#allocation6], 256
    $region25: #{tpu_custom_call.1} parent=1 // pred_fallthru
      _
    // Predicated region
    $region26: #{tpu_custom_call.1} parent=1 // pred_check
      _
    $region27: #{tpu_custom_call.1} parent=1 // pred_check_branch
      %55 = sbr.rel (0) target = $region29
    $region28: #{tpu_custom_call.1} parent=1 // pred_region
      %56 = dma.done [#allocation6], 256
    $region29: #{tpu_custom_call.1} parent=1 // pred_fallthru
      _
    %v57 = vld [vmem:[#allocation2] sm:$0xff]
    %v58 = vld [vmem:[#allocation5] sm:$0xff]
    %v59 = vld [vmem:[#allocation5 + $0x8] sm:$0xff]
    %v60 = vld [vmem:[%s2] sm:$0x1]
    %v61 = vlaneseq
    %v62 = vshrl.u32 %v61, 7
    %v63 = vsub.s32 0, %v62
    %v64 = vrot.slane %v60, %v63
    %vm65 = vcmask 130048
    %v67 = vsel %vm65, %v57, 0
    %69 = vmatprep.subr.mxu0 0.0
    %70 = vmatpush1.msra.mxu0 %v58
    %71 = vmatprep.subr.mxu0 0.0
    %72 = vmatpush1.msra.mxu0 %v59
    %73 = vmatprep.subr.mxu0 0.0
    %74 = vmatpush1.msra.mxu0 0.0
    %75 = vmatprep.subr.mxu0 0.0
    %76 = vmatpush1.msra.mxu0 0.0
    %77 = vmatprep.subr.mxu0 0.0
    %78 = vmatpush1.msra.mxu0 0.0
    %79 = vmatprep.subr.mxu0 0.0
    %80 = vmatpush1.msra.mxu0 0.0
    %81 = vmatprep.subr.mxu0 0.0
    %82 = vmatpush1.msra.mxu0 0.0
    %83 = vmatprep.subr.mxu0 0.0
    %84 = vmatpush1.msra.mxu0 0.0
    %85 = vmatprep.subr.mxu0 0.0
    %86 = vmatpush1.msra.mxu0 0.0
    %87 = vmatprep.subr.mxu0 0.0
    %88 = vmatpush1.msra.mxu0 0.0
    %89 = vmatprep.subr.mxu0 0.0
    %90 = vmatpush1.msra.mxu0 0.0
    %91 = vmatprep.subr.mxu0 0.0
    %92 = vmatpush1.msra.mxu0 0.0
    %93 = vmatprep.subr.mxu0 0.0
    %94 = vmatpush1.msra.mxu0 0.0
    %95 = vmatprep.subr.mxu0 0.0
    %96 = vmatpush1.msra.mxu0 0.0
    %97 = vmatprep.subr.mxu0 0.0
    %98 = vmatpush1.msra.mxu0 0.0
    %99 = vmatprep.subr.mxu0 0.0
    %100 = vmatpush1.msra.mxu0 0.0
    %101 = vmatprep.subr.mxu0 0.0
    %102 = vmatpush1.msra.mxu0 0.0
    %103 = vmatprep.subr.mxu0 0.0
    %104 = vmatpush1.msra.mxu0 0.0
    %105 = vmatprep.subr.mxu0 0.0
    %106 = vmatpush1.msra.mxu0 0.0
    %107 = vmatprep.subr.mxu0 0.0
    %108 = vmatpush1.msra.mxu0 0.0
    %109 = vmatprep.subr.mxu0 0.0
    %110 = vmatpush1.msra.mxu0 0.0
    %111 = vmatprep.subr.mxu0 0.0
    %112 = vmatpush1.msra.mxu0 0.0
    %113 = vmatprep.subr.mxu0 0.0
    %114 = vmatpush1.msra.mxu0 0.0
    %115 = vmatprep.subr.mxu0 0.0
    %116 = vmatpush1.msra.mxu0 0.0
    %117 = vmatprep.subr.mxu0 0.0
    %118 = vmatpush1.msra.mxu0 0.0
    %119 = vmatprep.subr.mxu0 0.0
    %120 = vmatpush1.msra.mxu0 0.0
    %121 = vmatprep.subr.mxu0 0.0
    %122 = vmatpush1.msra.mxu0 0.0
    %123 = vmatprep.subr.mxu0 0.0
    %124 = vmatpush1.msra.mxu0 0.0
    %125 = vmatprep.subr.mxu0 0.0
    %126 = vmatpush1.msra.mxu0 0.0
    %127 = vmatprep.subr.mxu0 0.0
    %128 = vmatpush1.msra.mxu0 0.0
    %129 = vmatprep.subr.mxu0 0.0
    %130 = vmatpush1.msra.mxu0 0.0
    %131 = vmatprep.subr.mxu0 0.0
    %132 = vmatpush1.msra.mxu0 0.0
    %133 = vmatprep.mubr.f32.mxu0 0.0
    %134 = vmatmul.mubr.f32.gmra.mrb[0].mxu0 %v67
    %v135 = vpop.f32.mrb[0].mxu0
    %v136 = vadd.f32 %v64, %v135
    %v137 = vpop.f32.mrb[0].mxu0
    %138 = vdwg.mxu0
    %v139 = vmax.f32 %v136, 0.0
    %v140 = vld [vmem:[#allocation7] sm:$0xff]
    %v141 = vld [vmem:[#allocation7 + $0x8] sm:$0xff]
    %v142 = vld [vmem:[%s2 + $0x1] sm:$0x1]
    %v143 = vlaneseq
    %v144 = vshrl.u32 %v143, 7
    %v145 = vsub.s32 0, %v144
    %v146 = vrot.slane %v142, %v145
    %v148 = vsel %vm65, %v139, 0
    %150 = vmatprep.subr.mxu0 0.0
    %151 = vmatpush1.msra.mxu0 %v140
    %152 = vmatprep.subr.mxu0 0.0
    %153 = vmatpush1.msra.mxu0 %v141
    %154 = vmatprep.subr.mxu0 0.0
    %155 = vmatpush1.msra.mxu0 0.0
    %156 = vmatprep.subr.mxu0 0.0
    %157 = vmatpush1.msra.mxu0 0.0
    %158 = vmatprep.subr.mxu0 0.0
    %159 = vmatpush1.msra.mxu0 0.0
    %160 = vmatprep.subr.mxu0 0.0
    %161 = vmatpush1.msra.mxu0 0.0
    %162 = vmatprep.subr.mxu0 0.0
    %163 = vmatpush1.msra.mxu0 0.0
    %164 = vmatprep.subr.mxu0 0.0
    %165 = vmatpush1.msra.mxu0 0.0
    %166 = vmatprep.subr.mxu0 0.0
    %167 = vmatpush1.msra.mxu0 0.0
    %168 = vmatprep.subr.mxu0 0.0
    %169 = vmatpush1.msra.mxu0 0.0
    %170 = vmatprep.subr.mxu0 0.0
    %171 = vmatpush1.msra.mxu0 0.0
    %172 = vmatprep.subr.mxu0 0.0
    %173 = vmatpush1.msra.mxu0 0.0
    %174 = vmatprep.subr.mxu0 0.0
    %175 = vmatpush1.msra.mxu0 0.0
    %176 = vmatprep.subr.mxu0 0.0
    %177 = vmatpush1.msra.mxu0 0.0
    %178 = vmatprep.subr.mxu0 0.0
    %179 = vmatpush1.msra.mxu0 0.0
    %180 = vmatprep.subr.mxu0 0.0
    %181 = vmatpush1.msra.mxu0 0.0
    %182 = vmatprep.subr.mxu0 0.0
    %183 = vmatpush1.msra.mxu0 0.0
    %184 = vmatprep.subr.mxu0 0.0
    %185 = vmatpush1.msra.mxu0 0.0
    %186 = vmatprep.subr.mxu0 0.0
    %187 = vmatpush1.msra.mxu0 0.0
    %188 = vmatprep.subr.mxu0 0.0
    %189 = vmatpush1.msra.mxu0 0.0
    %190 = vmatprep.subr.mxu0 0.0
    %191 = vmatpush1.msra.mxu0 0.0
    %192 = vmatprep.subr.mxu0 0.0
    %193 = vmatpush1.msra.mxu0 0.0
    %194 = vmatprep.subr.mxu0 0.0
    %195 = vmatpush1.msra.mxu0 0.0
    %196 = vmatprep.subr.mxu0 0.0
    %197 = vmatpush1.msra.mxu0 0.0
    %198 = vmatprep.subr.mxu0 0.0
    %199 = vmatpush1.msra.mxu0 0.0
    %200 = vmatprep.subr.mxu0 0.0
    %201 = vmatpush1.msra.mxu0 0.0
    %202 = vmatprep.subr.mxu0 0.0
    %203 = vmatpush1.msra.mxu0 0.0
    %204 = vmatprep.subr.mxu0 0.0
    %205 = vmatpush1.msra.mxu0 0.0
    %206 = vmatprep.subr.mxu0 0.0
    %207 = vmatpush1.msra.mxu0 0.0
    %208 = vmatprep.subr.mxu0 0.0
    %209 = vmatpush1.msra.mxu0 0.0
    %210 = vmatprep.subr.mxu0 0.0
    %211 = vmatpush1.msra.mxu0 0.0
    %212 = vmatprep.subr.mxu0 0.0
    %213 = vmatpush1.msra.mxu0 0.0
    %214 = vmatprep.mubr.f32.mxu0 0.0
    %215 = vmatmul.mubr.f32.gmra.mrb[0].mxu0 %v148
    %v216 = vpop.f32.mrb[0].mxu0
    %v217 = vadd.f32 %v146, %v216
    %v218 = vpop.f32.mrb[0].mxu0
    %219 = vdwg.mxu0
    %vm220 = vcmask 80896
    %221 = vst.msk [vmem:[#allocation8] sm:$0xff] %vm220, %v217
    // Predicated region
    $region30: #{tpu_custom_call.1} parent=1 // pred_check
      _
    $region31: #{tpu_custom_call.1} parent=1 // pred_check_branch
      %223 = sbr.rel (0) target = $region33
    $region32: #{tpu_custom_call.1} parent=1 // pred_region
      %s225 = ssub.s32 128, 128
      %226 = vsyncadd [#allocation4], %s225
      %s228 = sshll.u32 [#allocation8], 4
      %s229 = int_to_ptr.vmem [resolvable:$true] %s228
      %231 = dma.vmem_to_hbm [thread:$0]  %s229, 128, %s4, [#allocation4]
    $region33: #{tpu_custom_call.1} parent=1 // pred_fallthru
      _
    // Predicated region
    $region34: #{tpu_custom_call.1} parent=1 // pred_check
      _
    $region35: #{tpu_custom_call.1} parent=1 // pred_check_branch
      %233 = sbr.rel (0) target = $region37
    $region36: #{tpu_custom_call.1} parent=1 // pred_region
      %234 = dma.done [#allocation4], 128
    $region37: #{tpu_custom_call.1} parent=1 // pred_fallthru
      _
    %235 = vsyncpa [#allocation3], 1
    %236 = vsyncpa [#allocation6], 1
    %237 = vsyncpa [#allocation4], 1

</llo_original>
